<compile_context>
chip_gen: v7x
topology: tpu7x:2x2x1
jax: 0.10.0
libtpu: 0.0.40
codegen_flags: <defaults>
</compile_context>

<pallas_src>
import jax
import jax.numpy as jnp
from jax import lax
from jax.experimental import pallas as pl
from jax.experimental.pallas import tpu as pltpu


def dtfd_group_kernel(x_ref, wdr_ref, bdr_ref, watt_ref, batt_ref,
                      wwrow_ref, bw_ref, bc_ref,
                      pred_ref, pseudo_ref,
                      mid_sc, lg_sc, z_sc, m_sc, l_sc, accz_sc):
    """Streaming per-pseudo-bag pass: dimReduction -> fused gated attention /
    classifier projections -> online-softmax attention pooling -> CAM-based
    Max/Min instance distillation."""
    k = pl.program_id(1)
    n_tiles = pl.num_programs(1)
    tile_n = x_ref.shape[1]
    D = wwrow_ref.shape[1]

    @pl.when(k == 0)
    def _init():
        m_sc[...] = jnp.full_like(m_sc, -jnp.inf)
        l_sc[...] = jnp.zeros_like(l_sc)
        accz_sc[...] = jnp.zeros_like(accz_sc)

    # ---- per-tile streaming work -------------------------------------------
    x = x_ref[0]                                                     # (tile_n, in_dim) bf16
    mid = jnp.dot(x, wdr_ref[...], preferred_element_type=jnp.float32) + bdr_ref[...]
    mid = jnp.maximum(mid, 0.0)                                      # (tile_n, mDim) f32

    # fused [Wv | Wu | Wc] projection: one wide MXU pass
    proj = jnp.dot(mid.astype(watt_ref.dtype), watt_ref[...],
                   preferred_element_type=jnp.float32) + batt_ref[...]
    av = jnp.tanh(proj[:, :D])
    au = 1.0 / (1.0 + jnp.exp(-proj[:, D:2 * D]))
    z = proj[:, 2 * D:]                                              # mid @ Wc (no bias) = CAM logits

    # attention head: output width 1 -> VPU multiply + lane reduce (not MXU)
    lg = jnp.sum((av * au) * wwrow_ref[...], axis=-1, keepdims=True) + bw_ref[...]  # (tile_n, 1)

    # online softmax over the instances of this pseudo-bag
    m_old = m_sc[...]                                                # (1,1)
    m_new = jnp.maximum(m_old, jnp.max(lg, axis=0, keepdims=True))
    alpha = jnp.exp(m_old - m_new)
    p = jnp.exp(lg - m_new)                                          # (tile_n, 1)
    l_sc[...] = alpha * l_sc[...] + jnp.sum(p, axis=0, keepdims=True)
    accz_sc[...] = alpha * accz_sc[...] + jnp.sum(p * z, axis=0, keepdims=True)
    m_sc[...] = m_new

    # stash per-instance values needed at finalize
    off = pl.multiple_of(k * tile_n, tile_n)
    mid_sc[pl.ds(off, tile_n), :] = mid
    lg_sc[pl.ds(off, tile_n), :] = lg
    z_sc[pl.ds(off, tile_n), :] = z

    # ---- finalize: bag prediction + Max/Min instance distillation ----------
    @pl.when(k == n_tiles - 1)
    def _finalize():
        inv_l = pl.reciprocal(l_sc[...], approx=True)                # (1,1), EUP
        # tPredict = (sum_i a_i * mid_i) @ Wc + bc == (sum_i exp(lg_i - M) z_i)/L + bc
        pred_ref[0] = (accz_sc[...] * inv_l + bc_ref[...]).astype(pred_ref.dtype)

        # attention weights & CAM class probabilities over the whole pseudo-bag
        a_all = jnp.exp(lg_sc[...] - m_sc[...]) * inv_l              # (n, 1)
        scaled = a_all * z_sc[...]                                   # == (mid*a) @ Wc  (n, num_cls)
        smax = jnp.max(scaled, axis=-1, keepdims=True)
        e = jnp.exp(scaled - smax)
        score = e[:, -1:] * pl.reciprocal(jnp.sum(e, axis=-1, keepdims=True),
                                          approx=True)               # prob of last class, (n, 1)

        n_inst = score.shape[0]
        iota_col = lax.broadcasted_iota(jnp.int32, (n_inst, 1), 0)
        max_v = jnp.max(score, axis=0, keepdims=True)
        min_v = jnp.min(score, axis=0, keepdims=True)
        # torch.sort(descending)[:1] == (first) argmax ; [-1:] == (an) argmin
        max_idx = jnp.min(jnp.where(score == max_v, iota_col, n_inst), axis=0, keepdims=True)
        min_idx = jnp.min(jnp.where(score == min_v, iota_col, n_inst), axis=0, keepdims=True)

        iota_row = lax.broadcasted_iota(jnp.int32, (1, n_inst), 1)
        sel = jnp.concatenate(
            [(iota_row == max_idx).astype(jnp.float32),
             (iota_row == min_idx).astype(jnp.float32)], axis=0)     # (2, n) one-hot
        pseudo_ref[0] = jnp.dot(sel, mid_sc[...],
                                preferred_element_type=jnp.float32).astype(pseudo_ref.dtype)


def _att_cls_jax(x, params):
    """attCls over the 2*numgroup distilled rows.  Deliberately plain JAX:
    it is a handful of (8, mDim) ops, dominated by pallas_call launch cost."""
    av = jnp.tanh(x @ params["wv2"] + params["bv2"])
    au = jax.nn.sigmoid(x @ params["wu2"] + params["bu2"])
    a = (av * au) @ params["ww2"] + params["bw2"]                    # (M, 1)
    a = jax.nn.softmax(a, axis=0)
    afeat = jnp.sum(a * x, axis=0, keepdims=True)                    # (1, mDim)
    return afeat @ params["wc2"] + params["bc2"]


def _pick_instance_tile(n, target=512):
    if n <= target:
        return n
    for t in range(target, 7, -1):
        if t % 8 == 0 and n % t == 0:
            return t
    return n  # TODO(synk): pad/mask ragged instance tiles instead of falling back to whole group


def dtfd_mil_forward(tfeat, params, *, numgroup=4, tile_n=None, shuffle=True, shuffle_key=None):
    """Returns (slide_sub_preds [numgroup, num_cls], gSlidePred [1, num_cls])."""
    N, in_dim = tfeat.shape
    assert N % numgroup == 0, "N must be divisible by numgroup"
    # TODO(synk): ragged np.array_split chunks (N % numgroup != 0) not supported.
    n = N // numgroup

    if tile_n is None:
        tile_n = _pick_instance_tile(n)
    assert n % tile_n == 0 and (tile_n == n or tile_n % 8 == 0)
    n_tiles = n // tile_n

    mDim = params["wdr"].shape[1]
    D = params["wv"].shape[1]
    num_cls = params["wc"].shape[1]

    if shuffle:
        # TODO(synk): fuse this gather into the kernel (scalar-prefetched perm +
        # per-tile DMA gather) to avoid one full HBM round trip of tfeat.
        perm = jax.random.permutation(shuffle_key, N)
        tfeat = jnp.take(tfeat, perm, axis=0)

    cdt = jnp.bfloat16  # bf16 operands, f32 accumulation
    grouped = tfeat.astype(cdt).reshape(numgroup, n, in_dim)

    wdr = params["wdr"].astype(cdt)
    bdr = params["bdr"].astype(jnp.float32)
    # fused [Wv | Wu | Wc]  (classifier has no bias inside the fusion: CAM uses weight only)
    w_att = jnp.concatenate([params["wv"], params["wu"], params["wc"]], axis=1).astype(cdt)
    b_att = jnp.concatenate(
        [params["bv"], params["bu"], jnp.zeros((1, num_cls), jnp.float32)], axis=1
    ).astype(jnp.float32)
    ww_row = params["ww"].reshape(1, D).astype(jnp.float32)
    bw = params["bw"].astype(jnp.float32)
    bc = params["bc"].astype(jnp.float32)

    def _const(shape):
        zeros = (0,) * len(shape)
        return pl.BlockSpec(shape, lambda g, k, _z=zeros: _z)

    in_specs = [
        pl.BlockSpec((1, tile_n, in_dim), lambda g, k: (g, k, 0)),
        _const(wdr.shape), _const(bdr.shape),
        _const(w_att.shape), _const(b_att.shape),
        _const(ww_row.shape), _const(bw.shape), _const(bc.shape),
    ]
    out_specs = [
        pl.BlockSpec((1, 1, num_cls), lambda g, k: (g, 0, 0)),
        pl.BlockSpec((1, 2, mDim), lambda g, k: (g, 0, 0)),
    ]
    out_shapes = (
        jax.ShapeDtypeStruct((numgroup, 1, num_cls), jnp.float32),
        jax.ShapeDtypeStruct((numgroup, 2, mDim), jnp.float32),
    )
    scratch_shapes = [
        pltpu.VMEM((n, mDim), jnp.float32),      # staged mid rows (Max/Min distillation)
        pltpu.VMEM((n, 1), jnp.float32),         # attention logits
        pltpu.VMEM((n, num_cls), jnp.float32),   # CAM logits  mid @ Wc
        pltpu.VMEM((1, 1), jnp.float32),         # running max
        pltpu.VMEM((1, 1), jnp.float32),         # running sum
        pltpu.VMEM((1, num_cls), jnp.float32),   # running sum of exp(lg) * z
    ]

    # Explicit VMEM budget: double-buffered bf16 input tile + bf16 weights +
    # per-group scratch (lane padding included) + in-flight intermediates.
    est = (2 * tile_n * in_dim * 2
           + 2 * 2 * (in_dim * mDim + mDim * (2 * D + num_cls))
           + n * (mDim + 128 + 128) * 4
           + 4 * tile_n * (mDim + 2 * D + num_cls) * 4
           + (2 << 20))
    vmem_limit = int(min(max(est, 32 << 20), 120 << 20))

    sub_preds, pseudo = pl.pallas_call(
        dtfd_group_kernel,
        grid=(numgroup, n_tiles),
        in_specs=in_specs,
        out_specs=out_specs,
        out_shape=out_shapes,
        scratch_shapes=scratch_shapes,
        compiler_params=pltpu.CompilerParams(
            dimension_semantics=("parallel", "arbitrary"),
            vmem_limit_bytes=vmem_limit),
    )(grouped, wdr, bdr, w_att, b_att, ww_row, bw, bc)

    slide_sub_preds = sub_preds.reshape(numgroup, num_cls)           # cat along dim 0
    slide_pseudo_feat = pseudo.reshape(numgroup * 2, mDim)           # [max, min] per group

    g_slide_pred = _att_cls_jax(slide_pseudo_feat, params)
    return slide_sub_preds, g_slide_pred


if __name__ == "__main__":
    key = jax.random.PRNGKey(0)
    # small shapes; n = N/numgroup = 16 with tile_n = 8 exercises the 2-tile
    # streaming / online-softmax path per pseudo-bag.
    N, in_dim, mDim, D, num_cls, numgroup = 64, 32, 32, 16, 2, 4
    keys = jax.random.split(key, 20)

    def init(k, shape, scale=0.1):
        return (scale * jax.random.normal(k, shape)).astype(jnp.float32)

    params = {
        # dimReduction
        "wdr": init(keys[0], (in_dim, mDim)), "bdr": init(keys[1], (1, mDim)),
        # tier-1 gated attention
        "wv": init(keys[2], (mDim, D)), "bv": init(keys[3], (1, D)),
        "wu": init(keys[4], (mDim, D)), "bu": init(keys[5], (1, D)),
        "ww": init(keys[6], (D, 1)), "bw": init(keys[7], (1, 1)),
        # classifier
        "wc": init(keys[8], (mDim, num_cls)), "bc": init(keys[9], (1, num_cls)),
        # attCls (tier-2 attention + classifier)
        "wv2": init(keys[10], (mDim, D)), "bv2": init(keys[11], (1, D)),
        "wu2": init(keys[12], (mDim, D)), "bu2": init(keys[13], (1, D)),
        "ww2": init(keys[14], (D, 1)), "bw2": init(keys[15], (1, 1)),
        "wc2": init(keys[16], (mDim, num_cls)), "bc2": init(keys[17], (1, num_cls)),
    }

    tfeat = jax.random.normal(keys[18], (N, in_dim), dtype=jnp.float32)

    forward = jax.jit(dtfd_mil_forward, static_argnames=("numgroup", "tile_n", "shuffle"))
    slide_sub_preds, g_slide_pred = forward(
        tfeat, params, numgroup=numgroup, tile_n=8, shuffle=True, shuffle_key=keys[19])

    jax.block_until_ready((slide_sub_preds, g_slide_pred))
    assert slide_sub_preds.shape == (numgroup, num_cls)
    assert g_slide_pred.shape == (1, num_cls)
    assert bool(jnp.all(jnp.isfinite(slide_sub_preds)))
    assert bool(jnp.all(jnp.isfinite(g_slide_pred)))
    print("KERNEL_OK")
</pallas_src>

<mosaic_0001>
module attributes {stable_mosaic.version = 11 : i64} {
  func.func @dtfd_group_kernel(%arg0: i32, %arg1: i32, %arg2: memref<1x8x32xbf16, #tpu.memory_space<vmem>>, %arg3: memref<32x32xbf16, #tpu.memory_space<vmem>>, %arg4: memref<1x32xf32, #tpu.memory_space<vmem>>, %arg5: memref<32x34xbf16, #tpu.memory_space<vmem>>, %arg6: memref<1x34xf32, #tpu.memory_space<vmem>>, %arg7: memref<1x16xf32, #tpu.memory_space<vmem>>, %arg8: memref<1x1xf32, #tpu.memory_space<vmem>>, %arg9: memref<1x2xf32, #tpu.memory_space<vmem>>, %arg10: memref<1x1x2xf32, #tpu.memory_space<vmem>>, %arg11: memref<1x2x32xf32, #tpu.memory_space<vmem>>, %arg12: memref<16x32xf32, #tpu.memory_space<vmem>>, %arg13: memref<16x1xf32, #tpu.memory_space<vmem>>, %arg14: memref<16x2xf32, #tpu.memory_space<vmem>>, %arg15: memref<1x1xf32, #tpu.memory_space<vmem>>, %arg16: memref<1x1xf32, #tpu.memory_space<vmem>>, %arg17: memref<1x2xf32, #tpu.memory_space<vmem>>) attributes {dimension_semantics = [#tpu.dimension_semantics<parallel>, #tpu.dimension_semantics<arbitrary>], iteration_bounds = array<i64: 4, 2>, scalar_prefetch = 0 : i64, scratch_operands = 6 : i64, tpu.core_type = #tpu.core_type<tc>, window_params = [{transform_indices = @transform_0, window_bounds = array<i64: 1, 8, 32>}, {pipeline_mode = #tpu.pipeline_mode<synchronous>, transform_indices = @transform_1, window_bounds = array<i64: 32, 32>}, {pipeline_mode = #tpu.pipeline_mode<synchronous>, transform_indices = @transform_2, window_bounds = array<i64: 1, 32>}, {pipeline_mode = #tpu.pipeline_mode<synchronous>, transform_indices = @transform_3, window_bounds = array<i64: 32, 34>}, {pipeline_mode = #tpu.pipeline_mode<synchronous>, transform_indices = @transform_4, window_bounds = array<i64: 1, 34>}, {pipeline_mode = #tpu.pipeline_mode<synchronous>, transform_indices = @transform_5, window_bounds = array<i64: 1, 16>}, {pipeline_mode = #tpu.pipeline_mode<synchronous>, transform_indices = @transform_6, window_bounds = array<i64: 1, 1>}, {pipeline_mode = #tpu.pipeline_mode<synchronous>, transform_indices = @transform_7, window_bounds = array<i64: 1, 2>}, {transform_indices = @transform_8, window_bounds = array<i64: 1, 1, 2>}, {transform_indices = @transform_9, window_bounds = array<i64: 1, 2, 32>}]} {
    %c0_i32 = arith.constant 0 : i32
    %0 = arith.cmpi eq, %arg1, %c0_i32 : i32
    %1 = arith.extui %0 : i1 to i32
    %c0_i32_0 = arith.constant 0 : i32
    %2 = arith.cmpi ne, %1, %c0_i32_0 : i32
    scf.if %2 {
      %cst_40 = arith.constant 0xFF800000 : f32
      %74 = vector.broadcast %cst_40 : f32 to vector<1x1xf32>
      %c0_41 = arith.constant 0 : index
      %c0_42 = arith.constant 0 : index
      %75 = vector.load %arg15[%c0_41, %c0_42] : memref<1x1xf32, #tpu.memory_space<vmem>>, vector<1x1xf32>
      tpu.vector_store %arg15[%c0_41, %c0_42], %74 {strides = array<i32>} : memref<1x1xf32, #tpu.memory_space<vmem>>, vector<1x1xf32>,
      %cst_43 = arith.constant 0.000000e+00 : f32
      %76 = vector.broadcast %cst_43 : f32 to vector<1x1xf32>
      %c0_44 = arith.constant 0 : index
      %c0_45 = arith.constant 0 : index
      %77 = vector.load %arg16[%c0_44, %c0_45] : memref<1x1xf32, #tpu.memory_space<vmem>>, vector<1x1xf32>
      tpu.vector_store %arg16[%c0_44, %c0_45], %76 {strides = array<i32>} : memref<1x1xf32, #tpu.memory_space<vmem>>, vector<1x1xf32>,
      %cst_46 = arith.constant 0.000000e+00 : f32
      %78 = vector.broadcast %cst_46 : f32 to vector<1x2xf32>
      %c0_47 = arith.constant 0 : index
      %c0_48 = arith.constant 0 : index
      %79 = vector.load %arg17[%c0_47, %c0_48] : memref<1x2xf32, #tpu.memory_space<vmem>>, vector<1x2xf32>
      tpu.vector_store %arg17[%c0_47, %c0_48], %78 {strides = array<i32>} : memref<1x2xf32, #tpu.memory_space<vmem>>, vector<1x2xf32>,
    } else {
    }
    %c0 = arith.constant 0 : index
    %c0_1 = arith.constant 0 : index
    %c0_2 = arith.constant 0 : index
    %3 = vector.load %arg2[%c0, %c0_1, %c0_2] : memref<1x8x32xbf16, #tpu.memory_space<vmem>>, vector<1x8x32xbf16>
    %4 = vector.shape_cast %3 : vector<1x8x32xbf16> to vector<8x32xbf16>
    %c0_3 = arith.constant 0 : index
    %c0_4 = arith.constant 0 : index
    %5 = vector.load %arg3[%c0_3, %c0_4] : memref<32x32xbf16, #tpu.memory_space<vmem>>, vector<32x32xbf16>
    %cst = arith.constant dense<0.000000e+00> : vector<8x32xf32>
    %6 = tpu.matmul %4, %5, %cst {dimension_numbers = #tpu.dot_dimension_numbers<[1], [0], [0], [1], [0, 0, 1, 1], [], []>} : vector<8x32xbf16>, vector<32x32xbf16>, vector<8x32xf32> -> vector<8x32xf32>
    %c0_5 = arith.constant 0 : index
    %c0_6 = arith.constant 0 : index
    %7 = vector.load %arg4[%c0_5, %c0_6] : memref<1x32xf32, #tpu.memory_space<vmem>>, vector<1x32xf32>
    %8 = vector.broadcast %7 : vector<1x32xf32> to vector<8x32xf32>
    %9 = arith.addf %6, %8 : vector<8x32xf32>
    %cst_7 = arith.constant 0.000000e+00 : f32
    %10 = vector.broadcast %cst_7 : f32 to vector<8x32xf32>
    %11 = arith.maximumf %9, %10 : vector<8x32xf32>
    %12 = arith.truncf %11 : vector<8x32xf32> to vector<8x32xbf16>
    %c0_8 = arith.constant 0 : index
    %c0_9 = arith.constant 0 : index
    %13 = vector.load %arg5[%c0_8, %c0_9] : memref<32x34xbf16, #tpu.memory_space<vmem>>, vector<32x34xbf16>
    %cst_10 = arith.constant dense<0.000000e+00> : vector<8x34xf32>
    %14 = tpu.matmul %12, %13, %cst_10 {dimension_numbers = #tpu.dot_dimension_numbers<[1], [0], [0], [1], [0, 0, 1, 1], [], []>} : vector<8x32xbf16>, vector<32x34xbf16>, vector<8x34xf32> -> vector<8x34xf32>
    %c0_11 = arith.constant 0 : index
    %c0_12 = arith.constant 0 : index
    %15 = vector.load %arg6[%c0_11, %c0_12] : memref<1x34xf32, #tpu.memory_space<vmem>>, vector<1x34xf32>
    %16 = vector.broadcast %15 : vector<1x34xf32> to vector<8x34xf32>
    %17 = arith.addf %14, %16 : vector<8x34xf32>
    %18 = vector.extract_strided_slice %17 {offsets = [0, 0], sizes = [8, 16], strides = [1, 1]} : vector<8x34xf32> to vector<8x16xf32>
    %19 = math.tanh %18 : vector<8x16xf32>
    %20 = vector.extract_strided_slice %17 {offsets = [0, 16], sizes = [8, 16], strides = [1, 1]} : vector<8x34xf32> to vector<8x16xf32>
    %cst_13 = arith.constant 0.000000e+00 : f32
    %21 = vector.broadcast %cst_13 : f32 to vector<8x16xf32>
    %22 = arith.subf %21, %20 : vector<8x16xf32>
    %23 = math.exp %22 : vector<8x16xf32>
    %cst_14 = arith.constant 1.000000e+00 : f32
    %24 = vector.broadcast %cst_14 : f32 to vector<8x16xf32>
    %25 = arith.addf %24, %23 : vector<8x16xf32>
    %cst_15 = arith.constant 1.000000e+00 : f32
    %26 = vector.broadcast %cst_15 : f32 to vector<8x16xf32>
    %27 = arith.divf %26, %25 : vector<8x16xf32>
    %28 = vector.extract_strided_slice %17 {offsets = [0, 32], sizes = [8, 2], strides = [1, 1]} : vector<8x34xf32> to vector<8x2xf32>
    %29 = arith.mulf %19, %27 : vector<8x16xf32>
    %c0_16 = arith.constant 0 : index
    %c0_17 = arith.constant 0 : index
    %30 = vector.load %arg7[%c0_16, %c0_17] : memref<1x16xf32, #tpu.memory_space<vmem>>, vector<1x16xf32>
    %31 = vector.broadcast %30 : vector<1x16xf32> to vector<8x16xf32>
    %32 = arith.mulf %29, %31 : vector<8x16xf32>
    %cst_18 = arith.constant dense<0.000000e+00> : vector<8xf32>
    %33 = vector.multi_reduction <add>, %32, %cst_18 [1] : vector<8x16xf32> to vector<8xf32>
    %34 = vector.shape_cast %33 : vector<8xf32> to vector<8x1xf32>
    %c0_19 = arith.constant 0 : index
    %c0_20 = arith.constant 0 : index
    %35 = vector.load %arg8[%c0_19, %c0_20] : memref<1x1xf32, #tpu.memory_space<vmem>>, vector<1x1xf32>
    %36 = vector.broadcast %35 : vector<1x1xf32> to vector<8x1xf32>
    %37 = arith.addf %34, %36 : vector<8x1xf32>
    %c0_21 = arith.constant 0 : index
    %c0_22 = arith.constant 0 : index
    %38 = vector.load %arg15[%c0_21, %c0_22] : memref<1x1xf32, #tpu.memory_space<vmem>>, vector<1x1xf32>
    %cst_23 = arith.constant dense<0xFF800000> : vector<1xf32>
    %39 = vector.multi_reduction <maximumf>, %37, %cst_23 [0] : vector<8x1xf32> to vector<1xf32>
    %40 = vector.shape_cast %39 : vector<1xf32> to vector<1x1xf32>
    %41 = arith.maximumf %38, %40 : vector<1x1xf32>
    %42 = arith.subf %38, %41 : vector<1x1xf32>
    %43 = math.exp %42 : vector<1x1xf32>
    %44 = vector.broadcast %41 : vector<1x1xf32> to vector<8x1xf32>
    %45 = arith.subf %37, %44 : vector<8x1xf32>
    %46 = math.exp %45 : vector<8x1xf32>
    %c0_24 = arith.constant 0 : index
    %c0_25 = arith.constant 0 : index
    %47 = vector.load %arg16[%c0_24, %c0_25] : memref<1x1xf32, #tpu.memory_space<vmem>>, vector<1x1xf32>
    %48 = arith.mulf %43, %47 : vector<1x1xf32>
    %cst_26 = arith.constant dense<0.000000e+00> : vector<1xf32>
    %49 = vector.multi_reduction <add>, %46, %cst_26 [0] : vector<8x1xf32> to vector<1xf32>
    %50 = vector.shape_cast %49 : vector<1xf32> to vector<1x1xf32>
    %51 = arith.addf %48, %50 : vector<1x1xf32>
    %c0_27 = arith.constant 0 : index
    %c0_28 = arith.constant 0 : index
    %52 = vector.load %arg16[%c0_27, %c0_28] : memref<1x1xf32, #tpu.memory_space<vmem>>, vector<1x1xf32>
    tpu.vector_store %arg16[%c0_27, %c0_28], %51 {strides = array<i32>} : memref<1x1xf32, #tpu.memory_space<vmem>>, vector<1x1xf32>,
    %c0_29 = arith.constant 0 : index
    %c0_30 = arith.constant 0 : index
    %53 = vector.load %arg17[%c0_29, %c0_30] : memref<1x2xf32, #tpu.memory_space<vmem>>, vector<1x2xf32>
    %54 = vector.broadcast %43 : vector<1x1xf32> to vector<1x2xf32>
    %55 = arith.mulf %54, %53 : vector<1x2xf32>
    %56 = vector.broadcast %46 : vector<8x1xf32> to vector<8x2xf32>
    %57 = arith.mulf %56, %28 : vector<8x2xf32>
    %cst_31 = arith.constant dense<0.000000e+00> : vector<2xf32>
    %58 = vector.multi_reduction <add>, %57, %cst_31 [0] : vector<8x2xf32> to vector<2xf32>
    %59 = vector.shape_cast %58 : vector<2xf32> to vector<1x2xf32>
    %60 = arith.addf %55, %59 : vector<1x2xf32>
    %c0_32 = arith.constant 0 : index
    %c0_33 = arith.constant 0 : index
    %61 = vector.load %arg17[%c0_32, %c0_33] : memref<1x2xf32, #tpu.memory_space<vmem>>, vector<1x2xf32>
    tpu.vector_store %arg17[%c0_32, %c0_33], %60 {strides = array<i32>} : memref<1x2xf32, #tpu.memory_space<vmem>>, vector<1x2xf32>,
    %c0_34 = arith.constant 0 : index
    %c0_35 = arith.constant 0 : index
    %62 = vector.load %arg15[%c0_34, %c0_35] : memref<1x1xf32, #tpu.memory_space<vmem>>, vector<1x1xf32>
    tpu.vector_store %arg15[%c0_34, %c0_35], %41 {strides = array<i32>} : memref<1x1xf32, #tpu.memory_space<vmem>>, vector<1x1xf32>,
    %c8_i32 = arith.constant 8 : i32
    %63 = arith.muli %arg1, %c8_i32 : i32
    %64 = tpu.assume_multiple %63, 8 : i32
    %65 = arith.index_cast %64 : i32 to index
    %c0_36 = arith.constant 0 : index
    %66 = vector.load %arg12[%65, %c0_36] : memref<16x32xf32, #tpu.memory_space<vmem>>, vector<8x32xf32>
    tpu.vector_store %arg12[%65, %c0_36], %11 {strides = array<i32>} : memref<16x32xf32, #tpu.memory_space<vmem>>, vector<8x32xf32>,
    %67 = arith.index_cast %64 : i32 to index
    %c0_37 = arith.constant 0 : index
    %68 = vector.load %arg13[%67, %c0_37] : memref<16x1xf32, #tpu.memory_space<vmem>>, vector<8x1xf32>
    tpu.vector_store %arg13[%67, %c0_37], %37 {strides = array<i32>} : memref<16x1xf32, #tpu.memory_space<vmem>>, vector<8x1xf32>,
    %69 = arith.index_cast %64 : i32 to index
    %c0_38 = arith.constant 0 : index
    %70 = vector.load %arg14[%69, %c0_38] : memref<16x2xf32, #tpu.memory_space<vmem>>, vector<8x2xf32>
    tpu.vector_store %arg14[%69, %c0_38], %28 {strides = array<i32>} : memref<16x2xf32, #tpu.memory_space<vmem>>, vector<8x2xf32>,
    %c1_i32 = arith.constant 1 : i32
    %71 = arith.cmpi eq, %arg1, %c1_i32 : i32
    %72 = arith.extui %71 : i1 to i32
    %c0_i32_39 = arith.constant 0 : i32
    %73 = arith.cmpi ne, %72, %c0_i32_39 : i32
    scf.if %73 {
      %c0_40 = arith.constant 0 : index
      %c0_41 = arith.constant 0 : index
      %74 = vector.load %arg16[%c0_40, %c0_41] : memref<1x1xf32, #tpu.memory_space<vmem>>, vector<1x1xf32>
      %75 = tpu.reciprocal %74 {approx = true} : vector<1x1xf32> -> vector<1x1xf32>
      %c0_42 = arith.constant 0 : index
      %c0_43 = arith.constant 0 : index
      %76 = vector.load %arg17[%c0_42, %c0_43] : memref<1x2xf32, #tpu.memory_space<vmem>>, vector<1x2xf32>
      %77 = vector.broadcast %75 : vector<1x1xf32> to vector<1x2xf32>
      %78 = arith.mulf %76, %77 : vector<1x2xf32>
      %c0_44 = arith.constant 0 : index
      %c0_45 = arith.constant 0 : index
      %79 = vector.load %arg9[%c0_44, %c0_45] : memref<1x2xf32, #tpu.memory_space<vmem>>, vector<1x2xf32>
      %80 = arith.addf %78, %79 : vector<1x2xf32>
      %c0_46 = arith.constant 0 : index
      %c0_47 = arith.constant 0 : index
      %c0_48 = arith.constant 0 : index
      %81 = vector.load %arg10[%c0_46, %c0_47, %c0_48] : memref<1x1x2xf32, #tpu.memory_space<vmem>>, vector<1x1x2xf32>
      %82 = vector.shape_cast %81 : vector<1x1x2xf32> to vector<1x2xf32>
      %83 = vector.shape_cast %80 : vector<1x2xf32> to vector<1x1x2xf32>
      tpu.vector_store %arg10[%c0_46, %c0_47, %c0_48], %83 {strides = array<i32>} : memref<1x1x2xf32, #tpu.memory_space<vmem>>, vector<1x1x2xf32>,
      %c0_49 = arith.constant 0 : index
      %c0_50 = arith.constant 0 : index
      %84 = vector.load %arg13[%c0_49, %c0_50] : memref<16x1xf32, #tpu.memory_space<vmem>>, vector<16x1xf32>
      %c0_51 = arith.constant 0 : index
      %c0_52 = arith.constant 0 : index
      %85 = vector.load %arg15[%c0_51, %c0_52] : memref<1x1xf32, #tpu.memory_space<vmem>>, vector<1x1xf32>
      %86 = vector.broadcast %85 : vector<1x1xf32> to vector<16x1xf32>
      %87 = arith.subf %84, %86 : vector<16x1xf32>
      %88 = math.exp %87 : vector<16x1xf32>
      %89 = vector.broadcast %75 : vector<1x1xf32> to vector<16x1xf32>
      %90 = arith.mulf %88, %89 : vector<16x1xf32>
      %c0_53 = arith.constant 0 : index
      %c0_54 = arith.constant 0 : index
      %91 = vector.load %arg14[%c0_53, %c0_54] : memref<16x2xf32, #tpu.memory_space<vmem>>, vector<16x2xf32>
      %92 = vector.broadcast %90 : vector<16x1xf32> to vector<16x2xf32>
      %93 = arith.mulf %92, %91 : vector<16x2xf32>
      %cst_55 = arith.constant dense<0xFF800000> : vector<16xf32>
      %94 = vector.multi_reduction <maximumf>, %93, %cst_55 [1] : vector<16x2xf32> to vector<16xf32>
      %95 = vector.shape_cast %94 : vector<16xf32> to vector<16x1xf32>
      %96 = vector.broadcast %95 : vector<16x1xf32> to vector<16x2xf32>
      %97 = arith.subf %93, %96 : vector<16x2xf32>
      %98 = math.exp %97 : vector<16x2xf32>
      %99 = vector.extract_strided_slice %98 {offsets = [0, 1], sizes = [16, 1], strides = [1, 1]} : vector<16x2xf32> to vector<16x1xf32>
      %cst_56 = arith.constant dense<0.000000e+00> : vector<16xf32>
      %100 = vector.multi_reduction <add>, %98, %cst_56 [1] : vector<16x2xf32> to vector<16xf32>
      %101 = vector.shape_cast %100 : vector<16xf32> to vector<16x1xf32>
      %102 = tpu.reciprocal %101 {approx = true} : vector<16x1xf32> -> vector<16x1xf32>
      %103 = arith.mulf %99, %102 : vector<16x1xf32>
      %104 = tpu.iota {dimensions = array<i32: 0>} : vector<16x1xi32>
      %cst_57 = arith.constant dense<0xFF800000> : vector<1xf32>
      %105 = vector.multi_reduction <maximumf>, %103, %cst_57 [0] : vector<16x1xf32> to vector<1xf32>
      %106 = vector.shape_cast %105 : vector<1xf32> to vector<1x1xf32>
      %cst_58 = arith.constant dense<0x7F800000> : vector<1xf32>
      %107 = vector.multi_reduction <minimumf>, %103, %cst_58 [0] : vector<16x1xf32> to vector<1xf32>
      %108 = vector.shape_cast %107 : vector<1xf32> to vector<1x1xf32>
      %109 = vector.broadcast %106 : vector<1x1xf32> to vector<16x1xf32>
      %110 = arith.cmpf oeq, %103, %109 : vector<16x1xf32>
      %c16_i32 = arith.constant 16 : i32
      %111 = vector.broadcast %c16_i32 : i32 to vector<16x1xi32>
      %112 = arith.select %110, %104, %111 : vector<16x1xi1>, vector<16x1xi32>
      %cst_59 = arith.constant dense<2147483647> : vector<1xi32>
      %113 = vector.multi_reduction <minsi>, %112, %cst_59 [0] : vector<16x1xi32> to vector<1xi32>
      %114 = vector.shape_cast %113 : vector<1xi32> to vector<1x1xi32>
      %115 = vector.broadcast %108 : vector<1x1xf32> to vector<16x1xf32>
      %116 = arith.cmpf oeq, %103, %115 : vector<16x1xf32>
      %c16_i32_60 = arith.constant 16 : i32
      %117 = vector.broadcast %c16_i32_60 : i32 to vector<16x1xi32>
      %118 = arith.select %116, %104, %117 : vector<16x1xi1>, vector<16x1xi32>
      %cst_61 = arith.constant dense<2147483647> : vector<1xi32>
      %119 = vector.multi_reduction <minsi>, %118, %cst_61 [0] : vector<16x1xi32> to vector<1xi32>
      %120 = vector.shape_cast %119 : vector<1xi32> to vector<1x1xi32>
      %121 = tpu.iota {dimensions = array<i32: 1>} : vector<1x16xi32>
      %122 = vector.broadcast %114 : vector<1x1xi32> to vector<1x16xi32>
      %123 = arith.cmpi eq, %121, %122 : vector<1x16xi32>
      %124 = arith.extui %123 : vector<1x16xi1> to vector<1x16xi32>
      %125 = arith.sitofp %124 : vector<1x16xi32> to vector<1x16xf32>
      %126 = vector.broadcast %120 : vector<1x1xi32> to vector<1x16xi32>
      %127 = arith.cmpi eq, %121, %126 : vector<1x16xi32>
      %128 = arith.extui %127 : vector<1x16xi1> to vector<1x16xi32>
      %129 = arith.sitofp %128 : vector<1x16xi32> to vector<1x16xf32>
      %130 = tpu.concatenate %125, %129 in 0 : vector<1x16xf32>, vector<1x16xf32> -> vector<2x16xf32>
      %c0_62 = arith.constant 0 : index
      %c0_63 = arith.constant 0 : index
      %131 = vector.load %arg12[%c0_62, %c0_63] : memref<16x32xf32, #tpu.memory_space<vmem>>, vector<16x32xf32>
      %cst_64 = arith.constant dense<0.000000e+00> : vector<2x32xf32>
      %132 = tpu.matmul %130, %131, %cst_64 {dimension_numbers = #tpu.dot_dimension_numbers<[1], [0], [0], [1], [0, 0, 1, 1], [], []>} : vector<2x16xf32>, vector<16x32xf32>, vector<2x32xf32> -> vector<2x32xf32>
      %c0_65 = arith.constant 0 : index
      %c0_66 = arith.constant 0 : index
      %c0_67 = arith.constant 0 : index
      %133 = vector.load %arg11[%c0_65, %c0_66, %c0_67] : memref<1x2x32xf32, #tpu.memory_space<vmem>>, vector<1x2x32xf32>
      %134 = vector.shape_cast %133 : vector<1x2x32xf32> to vector<2x32xf32>
      %135 = vector.shape_cast %132 : vector<2x32xf32> to vector<1x2x32xf32>
      tpu.vector_store %arg11[%c0_65, %c0_66, %c0_67], %135 {strides = array<i32>} : memref<1x2x32xf32, #tpu.memory_space<vmem>>, vector<1x2x32xf32>,
    } else {
    }
    return
  }
  func.func @transform_0(%arg0: i32, %arg1: i32) -> (i32, i32, i32) {
    %c0_i32 = arith.constant 0 : i32
    %c0_i32_0 = arith.constant 0 : i32
    return %arg0, %arg1, %c0_i32 : i32, i32, i32
  }
  func.func @transform_1(%arg0: i32, %arg1: i32) -> (i32, i32) {
    %c0_i32 = arith.constant 0 : i32
    %c0_i32_0 = arith.constant 0 : i32
    %c0_i32_1 = arith.constant 0 : i32
    return %c0_i32, %c0_i32_0 : i32, i32
  }
  func.func @transform_2(%arg0: i32, %arg1: i32) -> (i32, i32) {
    %c0_i32 = arith.constant 0 : i32
    %c0_i32_0 = arith.constant 0 : i32
    %c0_i32_1 = arith.constant 0 : i32
    return %c0_i32, %c0_i32_0 : i32, i32
  }
  func.func @transform_3(%arg0: i32, %arg1: i32) -> (i32, i32) {
    %c0_i32 = arith.constant 0 : i32
    %c0_i32_0 = arith.constant 0 : i32
    %c0_i32_1 = arith.constant 0 : i32
    return %c0_i32, %c0_i32_0 : i32, i32
  }
  func.func @transform_4(%arg0: i32, %arg1: i32) -> (i32, i32) {
    %c0_i32 = arith.constant 0 : i32
    %c0_i32_0 = arith.constant 0 : i32
    %c0_i32_1 = arith.constant 0 : i32
    return %c0_i32, %c0_i32_0 : i32, i32
  }
  func.func @transform_5(%arg0: i32, %arg1: i32) -> (i32, i32) {
    %c0_i32 = arith.constant 0 : i32
    %c0_i32_0 = arith.constant 0 : i32
    %c0_i32_1 = arith.constant 0 : i32
    return %c0_i32, %c0_i32_0 : i32, i32
  }
  func.func @transform_6(%arg0: i32, %arg1: i32) -> (i32, i32) {
    %c0_i32 = arith.constant 0 : i32
    %c0_i32_0 = arith.constant 0 : i32
    %c0_i32_1 = arith.constant 0 : i32
    return %c0_i32, %c0_i32_0 : i32, i32
  }
  func.func @transform_7(%arg0: i32, %arg1: i32) -> (i32, i32) {
    %c0_i32 = arith.constant 0 : i32
    %c0_i32_0 = arith.constant 0 : i32
    %c0_i32_1 = arith.constant 0 : i32
    return %c0_i32, %c0_i32_0 : i32, i32
  }
  func.func @transform_8(%arg0: i32, %arg1: i32) -> (i32, i32, i32) {
    %c0_i32 = arith.constant 0 : i32
    %c0_i32_0 = arith.constant 0 : i32
    %c0_i32_1 = arith.constant 0 : i32
    return %arg0, %c0_i32, %c0_i32_0 : i32, i32, i32
  }
  func.func @transform_9(%arg0: i32, %arg1: i32) -> (i32, i32, i32) {
    %c0_i32 = arith.constant 0 : i32
    %c0_i32_0 = arith.constant 0 : i32
    %c0_i32_1 = arith.constant 0 : i32
    return %arg0, %c0_i32, %c0_i32_0 : i32, i32, i32
  }
}

</mosaic_0001>

<llo_original>
// kernel: dtfd_mil_forward.1
$region0: #{dtfd_mil_forward.1}
  #allocation0 [shape = 'u32[]', space=smem, size = 0x4, offset = 0x4, fixed_abs, tag = 'smem constant byte address 0x4 - core index']
  #allocation1 [shape = 'u32[144,128]{1,0:T(1,128)}', space=vmem, size = 0x12000, scoped, tag = 'internal scratch']
  #allocation2 [shape = 'f32[16,32]{1,0:T(8,128)}', space=vmem, size = 0x2000, scoped, tag = 'scratch operand']
  #allocation3 [shape = 'f32[16,1]{1,0:T(8,128)}', space=vmem, size = 0x2000, scoped, tag = 'scratch operand']
  #allocation4 [shape = 'f32[16,2]{1,0:T(8,128)}', space=vmem, size = 0x2000, scoped, tag = 'scratch operand']
  #allocation5 [shape = 'f32[1,1]{1,0:T(1,128)}', space=vmem, size = 0x200, scoped, tag = 'scratch operand']
  #allocation6 [shape = 'f32[1,1]{1,0:T(1,128)}', space=vmem, size = 0x200, scoped, tag = 'scratch operand']
  #allocation7 [shape = 'f32[1,2]{1,0:T(1,128)}', space=vmem, size = 0x200, scoped, tag = 'scratch operand']
  #allocation8 [shape = 'f32[1,1]{1,0:T(1,128)S(1)}', space=vmem, size = 0x200, scoped, tag = 'scoped memory for dtfd_mil_forward.1']
  %s0 = inlined_call_operand.vmem [shape: bf16[4,16,32], index: 0, kind: input, shape index: {}]
  %s1 = inlined_call_operand.vmem [shape: bf16[32,32], index: 1, kind: input, shape index: {}]
  %s2 = inlined_call_operand.vmem [shape: f32[1,32], index: 2, kind: input, shape index: {}]
  %s3 = inlined_call_operand.vmem [shape: bf16[32,34], index: 3, kind: input, shape index: {}]
  %s4 = inlined_call_operand.vmem [shape: f32[1,34], index: 4, kind: input, shape index: {}]
  %s5 = inlined_call_operand.vmem [shape: f32[1,16], index: 5, kind: input, shape index: {}]
  %s6 = inlined_call_operand.<no memory space> [shape: f32[1,1], index: 6, kind: input, shape index: {}]
  %s7 = inlined_call_operand.vmem [shape: f32[1,2], index: 7, kind: input, shape index: {}]
  %s8 = inlined_call_operand.vmem [shape: f32[4,1,2], index: 8, kind: output, shape index: {0}]
  %s9 = inlined_call_operand.vmem [shape: f32[4,2,32], index: 9, kind: output, shape index: {1}]
  %10 = xla_tuple %s8, %s9
  %s11 = sld [smem:[#allocation0]]
  $region81: #{dtfd_mil_forward.1} parent=0
    _
  %s13 = ssub.s32 1, %s11
  %s14 = scalar_select 0, %s13, %s11
  %v15 = vstv %s6
  %16 = vst [vmem:[#allocation8] sm:$0x1] %v15
  loop: start=0, step=1, limit=10
  $region2: #{dtfd_mil_forward.1} parent=0 // loop_pre_header
    _
  $region3: #{dtfd_mil_forward.1} parent=0 // loop_header
    %s18 = sphi 0, %s22
    %p19 = scmp.ge.s32.totalorder %s18, 10
    %s25 = sphi 0, %s37
    %s26 = sphi 0, %s33
    %s27 = sphi 0, %s25
    %s28 = sphi 0, %s26
    %s29 = sphi 0, %s27
    %s30 = sphi 0, %s28
    %s42 = sphi 0, %s44
    %s45 = sphi 0, %s42
    %s46 = sphi 0, %s45
    %s62 = sphi 0, %s46
    %s66 = sphi 0, %s66
    %s68 = sphi 0, %s66
    %s69 = sphi 0, %s68
    %s83 = sphi 0, %s69
    %s87 = sphi 0, %s87
    %s89 = sphi 0, %s87
    %s90 = sphi 0, %s89
    %s104 = sphi 0, %s90
    %s108 = sphi 0, %s108
    %s110 = sphi 0, %s108
    %s111 = sphi 0, %s110
    %s125 = sphi 0, %s111
    %s129 = sphi 0, %s129
    %s131 = sphi 0, %s129
    %s132 = sphi 0, %s131
    %s146 = sphi 0, %s132
    %s150 = sphi 0, %s150
    %s152 = sphi 0, %s150
    %s153 = sphi 0, %s152
    %s167 = sphi 0, %s153
    %s171 = sphi 0, %s171
    %s173 = sphi 0, %s171
    %s174 = sphi 0, %s173
    %s188 = sphi 0, %s174
    %s192 = sphi 0, %s192
    %s194 = sphi 0, %s192
    %s195 = sphi 0, %s194
    %s209 = sphi 0, %s195
    %s215 = sphi 0, %s217
    %s218 = sphi 0, %s215
    %s219 = sphi 0, %s218
    %s235 = sphi 0, %s219
    %s241 = sphi 0, %s243
    %s244 = sphi 0, %s241
    %s245 = sphi 0, %s244
    %s261 = sphi 0, %s245
  $region4: #{dtfd_mil_forward.1} parent=0 // loop_header_branch
    %21 = sbr.rel (%p19) target = $region8
  $region5: #{dtfd_mil_forward.1} parent=0 // loop_body
    %s23 = ssub.s32 %s18, 1
    %s24 = ssub.s32 %s18, 2
    %s31 = sadd.s32 1, %s26
    %p32 = scmp.ge.s32.totalorder %s31, 2
    %s33 = scalar_select %p32, 0, %s31
    %s34 = sadd.s32 1, %s25
    %s35 = scalar_select %p32, %s34, %s25
    %p36 = scmp.ge.s32.totalorder %s35, 4
    %s37 = scalar_select %p36, 0, %s35
    %s38 = ssub.s32 %s25, %s37
    %s39 = ssub.s32 %s26, %s33
    %s40 = sor.u32 %s38, %s39
    %p41 = scmp.eq.s32.totalorder %s40, 0
    %s43 = sadd.s32 %s42, 1
    %s44 = scalar_select %p41, %s42, %s43
    %p47 = pneg %p41
    %p48 = scmp.eq.s32.totalorder %s18, 7
    %p49 = por %p47, %p48
    %p50 = scmp.ne.s32.totalorder %s42, %s45
    %p51 = scmp.eq.s32.totalorder %s18, 0
    %p52 = por %p50, %p51
    %p53 = scmp.ne.s32.totalorder %s42, %s45
    %p54 = scmp.eq.s32.totalorder %s23, 7
    %p55 = por %p53, %p54
    %p56 = scmp.ne.s32.totalorder %s45, %s46
    %p57 = scmp.eq.s32.totalorder %s23, 0
    %p58 = por %p56, %p57
    %p59 = scmp.ne.s32.totalorder %s45, %s46
    %p60 = scmp.eq.s32.totalorder %s24, 7
    %p61 = por %p59, %p60
    %p63 = scmp.ne.s32.totalorder %s46, %s62
    %p64 = scmp.eq.s32.totalorder %s24, 0
    %p65 = por %p63, %p64
    %s67 = sadd.s32 %s66, 1
    %p70 = scmp.eq.s32.totalorder %s18, 7
    %p71 = scmp.ne.s32.totalorder %s66, %s68
    %p72 = scmp.eq.s32.totalorder %s18, 0
    %p73 = por %p71, %p72
    %p74 = scmp.ne.s32.totalorder %s66, %s68
    %p75 = scmp.eq.s32.totalorder %s23, 7
    %p76 = por %p74, %p75
    %p77 = scmp.ne.s32.totalorder %s68, %s69
    %p78 = scmp.eq.s32.totalorder %s23, 0
    %p79 = por %p77, %p78
    %p80 = scmp.ne.s32.totalorder %s68, %s69
    %p81 = scmp.eq.s32.totalorder %s24, 7
    %p82 = por %p80, %p81
    %p84 = scmp.ne.s32.totalorder %s69, %s83
    %p85 = scmp.eq.s32.totalorder %s24, 0
    %p86 = por %p84, %p85
    %s88 = sadd.s32 %s87, 1
    %p91 = scmp.eq.s32.totalorder %s18, 7
    %p92 = scmp.ne.s32.totalorder %s87, %s89
    %p93 = scmp.eq.s32.totalorder %s18, 0
    %p94 = por %p92, %p93
    %p95 = scmp.ne.s32.totalorder %s87, %s89
    %p96 = scmp.eq.s32.totalorder %s23, 7
    %p97 = por %p95, %p96
    %p98 = scmp.ne.s32.totalorder %s89, %s90
    %p99 = scmp.eq.s32.totalorder %s23, 0
    %p100 = por %p98, %p99
    %p101 = scmp.ne.s32.totalorder %s89, %s90
    %p102 = scmp.eq.s32.totalorder %s24, 7
    %p103 = por %p101, %p102
    %p105 = scmp.ne.s32.totalorder %s90, %s104
    %p106 = scmp.eq.s32.totalorder %s24, 0
    %p107 = por %p105, %p106
    %s109 = sadd.s32 %s108, 1
    %p112 = scmp.eq.s32.totalorder %s18, 7
    %p113 = scmp.ne.s32.totalorder %s108, %s110
    %p114 = scmp.eq.s32.totalorder %s18, 0
    %p115 = por %p113, %p114
    %p116 = scmp.ne.s32.totalorder %s108, %s110
    %p117 = scmp.eq.s32.totalorder %s23, 7
    %p118 = por %p116, %p117
    %p119 = scmp.ne.s32.totalorder %s110, %s111
    %p120 = scmp.eq.s32.totalorder %s23, 0
    %p121 = por %p119, %p120
    %p122 = scmp.ne.s32.totalorder %s110, %s111
    %p123 = scmp.eq.s32.totalorder %s24, 7
    %p124 = por %p122, %p123
    %p126 = scmp.ne.s32.totalorder %s111, %s125
    %p127 = scmp.eq.s32.totalorder %s24, 0
    %p128 = por %p126, %p127
    %s130 = sadd.s32 %s129, 1
    %p133 = scmp.eq.s32.totalorder %s18, 7
    %p134 = scmp.ne.s32.totalorder %s129, %s131
    %p135 = scmp.eq.s32.totalorder %s18, 0
    %p136 = por %p134, %p135
    %p137 = scmp.ne.s32.totalorder %s129, %s131
    %p138 = scmp.eq.s32.totalorder %s23, 7
    %p139 = por %p137, %p138
    %p140 = scmp.ne.s32.totalorder %s131, %s132
    %p141 = scmp.eq.s32.totalorder %s23, 0
    %p142 = por %p140, %p141
    %p143 = scmp.ne.s32.totalorder %s131, %s132
    %p144 = scmp.eq.s32.totalorder %s24, 7
    %p145 = por %p143, %p144
    %p147 = scmp.ne.s32.totalorder %s132, %s146
    %p148 = scmp.eq.s32.totalorder %s24, 0
    %p149 = por %p147, %p148
    %s151 = sadd.s32 %s150, 1
    %p154 = scmp.eq.s32.totalorder %s18, 7
    %p155 = scmp.ne.s32.totalorder %s150, %s152
    %p156 = scmp.eq.s32.totalorder %s18, 0
    %p157 = por %p155, %p156
    %p158 = scmp.ne.s32.totalorder %s150, %s152
    %p159 = scmp.eq.s32.totalorder %s23, 7
    %p160 = por %p158, %p159
    %p161 = scmp.ne.s32.totalorder %s152, %s153
    %p162 = scmp.eq.s32.totalorder %s23, 0
    %p163 = por %p161, %p162
    %p164 = scmp.ne.s32.totalorder %s152, %s153
    %p165 = scmp.eq.s32.totalorder %s24, 7
    %p166 = por %p164, %p165
    %p168 = scmp.ne.s32.totalorder %s153, %s167
    %p169 = scmp.eq.s32.totalorder %s24, 0
    %p170 = por %p168, %p169
    %s172 = sadd.s32 %s171, 1
    %p175 = scmp.eq.s32.totalorder %s18, 7
    %p176 = scmp.ne.s32.totalorder %s171, %s173
    %p177 = scmp.eq.s32.totalorder %s18, 0
    %p178 = por %p176, %p177
    %p179 = scmp.ne.s32.totalorder %s171, %s173
    %p180 = scmp.eq.s32.totalorder %s23, 7
    %p181 = por %p179, %p180
    %p182 = scmp.ne.s32.totalorder %s173, %s174
    %p183 = scmp.eq.s32.totalorder %s23, 0
    %p184 = por %p182, %p183
    %p185 = scmp.ne.s32.totalorder %s173, %s174
    %p186 = scmp.eq.s32.totalorder %s24, 7
    %p187 = por %p185, %p186
    %p189 = scmp.ne.s32.totalorder %s174, %s188
    %p190 = scmp.eq.s32.totalorder %s24, 0
    %p191 = por %p189, %p190
    %s193 = sadd.s32 %s192, 1
    %p196 = scmp.eq.s32.totalorder %s18, 7
    %p197 = scmp.ne.s32.totalorder %s192, %s194
    %p198 = scmp.eq.s32.totalorder %s18, 0
    %p199 = por %p197, %p198
    %p200 = scmp.ne.s32.totalorder %s192, %s194
    %p201 = scmp.eq.s32.totalorder %s23, 7
    %p202 = por %p200, %p201
    %p203 = scmp.ne.s32.totalorder %s194, %s195
    %p204 = scmp.eq.s32.totalorder %s23, 0
    %p205 = por %p203, %p204
    %p206 = scmp.ne.s32.totalorder %s194, %s195
    %p207 = scmp.eq.s32.totalorder %s24, 7
    %p208 = por %p206, %p207
    %p210 = scmp.ne.s32.totalorder %s195, %s209
    %p211 = scmp.eq.s32.totalorder %s24, 0
    %p212 = por %p210, %p211
    %s213 = ssub.s32 %s25, %s37
    %p214 = scmp.eq.s32.totalorder %s213, 0
    %s216 = sadd.s32 %s215, 1
    %s217 = scalar_select %p214, %s215, %s216
    %p220 = pneg %p214
    %p221 = scmp.eq.s32.totalorder %s18, 7
    %p222 = por %p220, %p221
    %p223 = scmp.ne.s32.totalorder %s215, %s218
    %p224 = scmp.eq.s32.totalorder %s18, 0
    %p225 = por %p223, %p224
    %p226 = scmp.ne.s32.totalorder %s215, %s218
    %p227 = scmp.eq.s32.totalorder %s23, 7
    %p228 = por %p226, %p227
    %p229 = scmp.ne.s32.totalorder %s218, %s219
    %p230 = scmp.eq.s32.totalorder %s23, 0
    %p231 = por %p229, %p230
    %p232 = scmp.ne.s32.totalorder %s218, %s219
    %p233 = scmp.eq.s32.totalorder %s24, 7
    %p234 = por %p232, %p233
    %p236 = scmp.ne.s32.totalorder %s219, %s235
    %p237 = scmp.eq.s32.totalorder %s24, 0
    %p238 = por %p236, %p237
    %s239 = ssub.s32 %s25, %s37
    %p240 = scmp.eq.s32.totalorder %s239, 0
    %s242 = sadd.s32 %s241, 1
    %s243 = scalar_select %p240, %s241, %s242
    %p246 = pneg %p240
    %p247 = scmp.eq.s32.totalorder %s18, 7
    %p248 = por %p246, %p247
    %p249 = scmp.ne.s32.totalorder %s241, %s244
    %p250 = scmp.eq.s32.totalorder %s18, 0
    %p251 = por %p249, %p250
    %p252 = scmp.ne.s32.totalorder %s241, %s244
    %p253 = scmp.eq.s32.totalorder %s23, 7
    %p254 = por %p252, %p253
    %p255 = scmp.ne.s32.totalorder %s244, %s245
    %p256 = scmp.eq.s32.totalorder %s23, 0
    %p257 = por %p255, %p256
    %p258 = scmp.ne.s32.totalorder %s244, %s245
    %p259 = scmp.eq.s32.totalorder %s24, 7
    %p260 = por %p258, %p259
    %p262 = scmp.ne.s32.totalorder %s245, %s261
    %p263 = scmp.eq.s32.totalorder %s24, 0
    %p264 = por %p262, %p263
    %p265 = scmp.le.s32.totalorder 1, %s18
    %p266 = scmp.lt.s32.totalorder %s18, 9
    %p267 = pnand %p265, %p266
    %p268 = pneg %p267
    // Predicated region
    $region9: #{dtfd_mil_forward.1} parent=5 // pred_check
      _
    $region10: #{dtfd_mil_forward.1} parent=5 // pred_check_branch
      %270 = sbr.rel (%p267) target = $region12
    $region11: #{dtfd_mil_forward.1} parent=5 // pred_region
      %s271 = ssub.s32 %s18, 1
      // Predicated region
      $region13: #{dtfd_mil_forward.1} parent=11 // pred_check
        %p272 = pneg %p79
      $region14: #{dtfd_mil_forward.1} parent=11 // pred_check_branch
        %274 = sbr.rel (%p272) target = $region16
      $region15: #{dtfd_mil_forward.1} parent=11 // pred_region
        _
      $region16: #{dtfd_mil_forward.1} parent=11 // pred_fallthru
        _
      // Predicated region
      $region17: #{dtfd_mil_forward.1} parent=11 // pred_check
        %p275 = pneg %p100
      $region18: #{dtfd_mil_forward.1} parent=11 // pred_check_branch
        %277 = sbr.rel (%p275) target = $region20
      $region19: #{dtfd_mil_forward.1} parent=11 // pred_region
        _
      $region20: #{dtfd_mil_forward.1} parent=11 // pred_fallthru
        _
      // Predicated region
      $region21: #{dtfd_mil_forward.1} parent=11 // pred_check
        %p278 = pneg %p121
      $region22: #{dtfd_mil_forward.1} parent=11 // pred_check_branch
        %280 = sbr.rel (%p278) target = $region24
      $region23: #{dtfd_mil_forward.1} parent=11 // pred_region
        _
      $region24: #{dtfd_mil_forward.1} parent=11 // pred_fallthru
        _
      // Predicated region
      $region25: #{dtfd_mil_forward.1} parent=11 // pred_check
        %p281 = pneg %p142
      $region26: #{dtfd_mil_forward.1} parent=11 // pred_check_branch
        %283 = sbr.rel (%p281) target = $region28
      $region27: #{dtfd_mil_forward.1} parent=11 // pred_region
        _
      $region28: #{dtfd_mil_forward.1} parent=11 // pred_fallthru
        _
      // Predicated region
      $region29: #{dtfd_mil_forward.1} parent=11 // pred_check
        %p284 = pneg %p163
      $region30: #{dtfd_mil_forward.1} parent=11 // pred_check_branch
        %286 = sbr.rel (%p284) target = $region32
      $region31: #{dtfd_mil_forward.1} parent=11 // pred_region
        _
      $region32: #{dtfd_mil_forward.1} parent=11 // pred_fallthru
        _
      // Predicated region
      $region33: #{dtfd_mil_forward.1} parent=11 // pred_check
        %p287 = pneg %p184
      $region34: #{dtfd_mil_forward.1} parent=11 // pred_check_branch
        %289 = sbr.rel (%p287) target = $region36
      $region35: #{dtfd_mil_forward.1} parent=11 // pred_region
        _
      $region36: #{dtfd_mil_forward.1} parent=11 // pred_fallthru
        _
      // Predicated region
      $region37: #{dtfd_mil_forward.1} parent=11 // pred_check
        %p290 = pneg %p205
      $region38: #{dtfd_mil_forward.1} parent=11 // pred_check_branch
        %292 = sbr.rel (%p290) target = $region40
      $region39: #{dtfd_mil_forward.1} parent=11 // pred_region
        _
      $region40: #{dtfd_mil_forward.1} parent=11 // pred_fallthru
        _
    $region12: #{dtfd_mil_forward.1} parent=5 // pred_fallthru
      _
    %p293 = scmp.lt.s32.totalorder %s18, 8
    // Predicated region
    $region41: #{dtfd_mil_forward.1} parent=5 // pred_check
      %p294 = pneg %p293
    $region42: #{dtfd_mil_forward.1} parent=5 // pred_check_branch
      %296 = sbr.rel (%p294) target = $region44
    $region43: #{dtfd_mil_forward.1} parent=5 // pred_region
      // Predicated region
      $region45: #{dtfd_mil_forward.1} parent=43 // pred_check
        %p297 = pneg %p52
      $region46: #{dtfd_mil_forward.1} parent=43 // pred_check_branch
        %299 = sbr.rel (%p297) target = $region48
      $region47: #{dtfd_mil_forward.1} parent=43 // pred_region
        %p300 = scmp.lt.s32.totalorder %s25, 3
        %s301 = scalar_select %p300, %s25, 3
        %p302 = scmp.lt.s32.totalorder %s26, 1
        %s303 = scalar_select %p302, %s26, 1
        %s304 = smul.addr %s301, 2
        %s305 = sadd.s32 %s303, %s304
        %s306 = smul.addr %s305, 4
        %s307 = scalar_lea.vmem %s0, %s306
      $region48: #{dtfd_mil_forward.1} parent=43 // pred_fallthru
        _
    $region44: #{dtfd_mil_forward.1} parent=5 // pred_fallthru
      _
    %p308 = scmp.le.s32.totalorder 1, %s18
    %p309 = scmp.lt.s32.totalorder %s18, 9
    %p310 = pnand %p308, %p309
    %p311 = pneg %p310
    // Predicated region
    $region49: #{dtfd_mil_forward.1} parent=5 // pred_check
      _
    $region50: #{dtfd_mil_forward.1} parent=5 // pred_check_branch
      %313 = sbr.rel (%p310) target = $region52
    $region51: #{dtfd_mil_forward.1} parent=5 // pred_region
      %s314 = ssub.s32 %s18, 1
      %p315 = scmp.lt.s32.totalorder %s27, 3
      %s316 = scalar_select %p315, %s27, 3
      %p317 = scmp.lt.s32.totalorder %s28, 1
      %s318 = scalar_select %p317, %s28, 1
      %s319 = smul.addr %s316, 2
      %s320 = sadd.s32 %s318, %s319
      %s321 = smul.addr %s320, 4
      %s322 = scalar_lea.vmem %s0, %s321
      %p323 = pneg %p58
      %p324 = pneg %p55
      %p325 = pneg %p79
      %p326 = pneg %p76
      %p327 = pneg %p100
      %p328 = pneg %p97
      %p329 = pneg %p121
      %p330 = pneg %p118
      %p331 = pneg %p142
      %p332 = pneg %p139
      %p333 = pneg %p163
      %p334 = pneg %p160
      %p335 = pneg %p184
      %p336 = pneg %p181
      %p337 = pneg %p205
      %p338 = pneg %p202
      %p339 = pneg %p231
      %p340 = pneg %p228
      %p341 = scmp.lt.s32.totalorder %s27, 3
      %s342 = scalar_select %p341, %s27, 3
      %s343 = scalar_lea.vmem %s8, %s342
      %p344 = pneg %p257
      %p345 = pneg %p254
      %p346 = scmp.lt.s32.totalorder %s27, 3
      %s347 = scalar_select %p346, %s27, 3
      %s348 = smul.addr %s347, 2
      %s349 = scalar_lea.vmem %s9, %s348
      %p350 = scmp.lt.s32.totalorder %s27, 3
      %s351 = scalar_select %p350, %s27, 3
      %p352 = scmp.lt.s32.totalorder %s28, 1
      %s353 = scalar_select %p352, %s28, 1
      %s354 = smul.addr %s351, 2
      %s355 = sadd.s32 %s353, %s354
      %s356 = smul.addr %s355, 4
      %s357 = scalar_lea.vmem %s0, %s356
      %p358 = scmp.lt.s32.totalorder %s27, 3
      %s359 = scalar_select %p358, %s27, 3
      %s360 = scalar_lea.vmem %s8, %s359
      %p361 = scmp.lt.s32.totalorder %s27, 3
      %s362 = scalar_select %p361, %s27, 3
      %s363 = smul.addr %s362, 2
      %s364 = scalar_lea.vmem %s9, %s363
      %p366 = scmp.eq.s32.totalorder %s28, 0
      // Predicated region
      $region53: #{dtfd_mil_forward.1} parent=51 // pred_check
        %p367 = pneg %p366
      $region54: #{dtfd_mil_forward.1} parent=51 // pred_check_branch
        %369 = sbr.rel (%p367) target = $region56
      $region55: #{dtfd_mil_forward.1} parent=51 // pred_region
        %vm370 = vcmask 0
        %371 = vst.msk [vmem:[#allocation5] sm:$0x1] %vm370, -inf
        %372 = vst.msk [vmem:[#allocation6] sm:$0x1] %vm370, 0.0
        %vm373 = vcmask 8192
        %374 = vst.msk [vmem:[#allocation7] sm:$0x1] %vm373, 0.0
      $region56: #{dtfd_mil_forward.1} parent=51 // pred_fallthru
        _
      %v375 = vld [vmem:[%s357] sm:$0xf]
      %v376 = vld [vmem:[%s1] sm:$0xf]
      %v377 = vld [vmem:[%s1 + $0x4] sm:$0xf]
      %v378 = vld [vmem:[%s1 + $0x8] sm:$0xf]
      %v379 = vld [vmem:[%s1 + $0xc] sm:$0xf]
      %v380 = vld [vmem:[%s2] sm:$0x1]
      %v382 = vlaneseq
      %v383 = vshrl.u32 %v382, 7
      %v384 = vsub.s32 0, %v383
      %v385 = vrot.slane %v380, %v384
      %v391 = vunpack.c.l.b16 %v376
      %v392 = vunpack.c.l.b16 %v377
      %v393 = vunpack.c.l.b16 %v378
      %v394 = vunpack.c.l.b16 %v379
      %v395 = vpack.c.b16 %v392, %v391
      %v396 = vpack.c.b16 %v394, %v393
      %vm399 = vcmask 261120
      %v401 = vsel %vm399, %v375, 0
      %403 = vmatprep.subr.bf16.mxu0 0
      %404 = vmatpush1.bf16.msra.mxu0 %v395
      %405 = vmatprep.subr.bf16.mxu0 0
      %406 = vmatpush1.bf16.msra.mxu0 %v396
      %407 = vmatprep.subr.bf16.mxu0 0
      %408 = vmatpush1.bf16.msra.mxu0 0
      %409 = vmatprep.subr.bf16.mxu0 0
      %410 = vmatpush1.bf16.msra.mxu0 0
      %411 = vmatprep.subr.bf16.mxu0 0
      %412 = vmatpush1.bf16.msra.mxu0 0
      %413 = vmatprep.subr.bf16.mxu0 0
      %414 = vmatpush1.bf16.msra.mxu0 0
      %415 = vmatprep.subr.bf16.mxu0 0
      %416 = vmatpush1.bf16.msra.mxu0 0
      %417 = vmatprep.subr.bf16.mxu0 0
      %418 = vmatpush1.bf16.msra.mxu0 0
      %419 = vmatprep.subr.bf16.mxu0 0
      %420 = vmatpush1.bf16.msra.mxu0 0
      %421 = vmatprep.subr.bf16.mxu0 0
      %422 = vmatpush1.bf16.msra.mxu0 0
      %423 = vmatprep.subr.bf16.mxu0 0
      %424 = vmatpush1.bf16.msra.mxu0 0
      %425 = vmatprep.subr.bf16.mxu0 0
      %426 = vmatpush1.bf16.msra.mxu0 0
      %427 = vmatprep.subr.bf16.mxu0 0
      %428 = vmatpush1.bf16.msra.mxu0 0
      %429 = vmatprep.subr.bf16.mxu0 0
      %430 = vmatpush1.bf16.msra.mxu0 0
      %431 = vmatprep.subr.bf16.mxu0 0
      %432 = vmatpush1.bf16.msra.mxu0 0
      %433 = vmatprep.subr.bf16.mxu0 0
      %434 = vmatpush1.bf16.msra.mxu0 0
      %435 = vmatprep.mubr.bf16.mxu0 0
      %436 = vmatmul.mubr.bf16.gmra.mrb[0].mxu0 %v401
      %v437 = vpop.f32.mrb[0].mxu0
      %v438 = vadd.f32 %v385, %v437
      %v439 = vpop.f32.mrb[0].mxu0
      %v440 = vpop.f32.mrb[0].mxu0
      %v441 = vpop.f32.mrb[0].mxu0
      %442 = vdwg.mxu0
      %v443 = vmax.f32 %v438, 0.0
      %v444 = vpack.c.bf16 %v443, %v443
      %v445 = vld [vmem:[%s3] sm:$0xf]
      %v446 = vld [vmem:[%s3 + $0x4] sm:$0xf]
      %v447 = vld [vmem:[%s3 + $0x8] sm:$0xf]
      %v448 = vld [vmem:[%s3 + $0xc] sm:$0xf]
      %v449 = vld [vmem:[%s4] sm:$0x1]
      %v451 = vlaneseq
      %v452 = vshrl.u32 %v451, 7
      %v453 = vsub.s32 0, %v452
      %v454 = vrot.slane %v449, %v453
      %v460 = vunpack.c.l.b16 %v445
      %v461 = vunpack.c.l.b16 %v446
      %v462 = vunpack.c.l.b16 %v447
      %v463 = vunpack.c.l.b16 %v448
      %v464 = vpack.c.b16 %v461, %v460
      %v465 = vpack.c.b16 %v463, %v462
      %v469 = vsel %vm399, %v444, 0
      %471 = vmatprep.subr.bf16.mxu0 0
      %472 = vmatpush1.bf16.msra.mxu0 %v464
      %473 = vmatprep.subr.bf16.mxu0 0
      %474 = vmatpush1.bf16.msra.mxu0 %v465
      %475 = vmatprep.subr.bf16.mxu0 0
      %476 = vmatpush1.bf16.msra.mxu0 0
      %477 = vmatprep.subr.bf16.mxu0 0
      %478 = vmatpush1.bf16.msra.mxu0 0
      %479 = vmatprep.subr.bf16.mxu0 0
      %480 = vmatpush1.bf16.msra.mxu0 0
      %481 = vmatprep.subr.bf16.mxu0 0
      %482 = vmatpush1.bf16.msra.mxu0 0
      %483 = vmatprep.subr.bf16.mxu0 0
      %484 = vmatpush1.bf16.msra.mxu0 0
      %485 = vmatprep.subr.bf16.mxu0 0
      %486 = vmatpush1.bf16.msra.mxu0 0
      %487 = vmatprep.subr.bf16.mxu0 0
      %488 = vmatpush1.bf16.msra.mxu0 0
      %489 = vmatprep.subr.bf16.mxu0 0
      %490 = vmatpush1.bf16.msra.mxu0 0
      %491 = vmatprep.subr.bf16.mxu0 0
      %492 = vmatpush1.bf16.msra.mxu0 0
      %493 = vmatprep.subr.bf16.mxu0 0
      %494 = vmatpush1.bf16.msra.mxu0 0
      %495 = vmatprep.subr.bf16.mxu0 0
      %496 = vmatpush1.bf16.msra.mxu0 0
      %497 = vmatprep.subr.bf16.mxu0 0
      %498 = vmatpush1.bf16.msra.mxu0 0
      %499 = vmatprep.subr.bf16.mxu0 0
      %500 = vmatpush1.bf16.msra.mxu0 0
      %501 = vmatprep.subr.bf16.mxu0 0
      %502 = vmatpush1.bf16.msra.mxu0 0
      %503 = vmatprep.mubr.bf16.mxu0 0
      %504 = vmatmul.mubr.bf16.gmra.mrb[0].mxu0 %v469
      %v505 = vpop.f32.mrb[0].mxu0
      %v506 = vadd.f32 %v454, %v505
      %v507 = vpop.f32.mrb[0].mxu0
      %v508 = vpop.f32.mrb[0].mxu0
      %v509 = vpop.f32.mrb[0].mxu0
      %510 = vdwg.mxu0
      %v511 = vtanh.pop %v506
      %v512 = vsub.f32 0.0, %v506
      %v513 = vmul.f32 %v512, 1.442695
      %v514 = vpow.pop %v513
      %v515 = vadd.f32 %v514, 1.0
      %v516 = vrcp.pop %v515
      %v517 = vmul.f32 1.0, %v516
      %519 = vrot.lane.b32.xlu0 %v517, 112
      %v520 = vpop.permute.xlu0 %519
      %v522 = vmul.f32 %v511, %v520
      %v523 = vld [vmem:[%s5] sm:$0x1]
      %v525 = vlaneseq
      %v526 = vshrl.u32 %v525, 7
      %v527 = vsub.s32 0, %v526
      %v528 = vrot.slane %v523, %v527
      %v530 = vmul.f32 %v522, %v528
      %vm531 = vcmask 130048
      %v532 = vsel %vm531, %v530, 0.0
      %533 = vadd.xlane.f32.xlu0 %v532
      %v534 = vpop.xlane.xlu0 %533
      %v535 = vld [vmem:[#allocation8] sm:$0x1]
      %v537 = vlaneseq
      %v538 = vshrl.u32 %v537, 7
      %v539 = vsub.s32 0, %v538
      %v540 = vrot.slane %v535, %v539
      %v542 = vadd.f32 %v534, %v540
      %v543 = vld [vmem:[#allocation5] sm:$0x1]
      %vm544 = vcmask 7168
      %v545 = vsel %vm544, %v542, -inf
      %v546 = vrot.slane %v545, 4
      %v547 = vmax.f32 %v545, %v546
      %v548 = vrot.slane %v547, 2
      %v549 = vmax.f32 %v547, %v548
      %v550 = vrot.slane %v549, 1
      %v551 = vmax.f32 %v549, %v550
      %v552 = vmax.f32 %v543, %v551
      %v553 = vsub.f32 %v543, %v552
      %v554 = vmul.f32 %v553, 1.442695
      %v555 = vpow.pop %v554
      %v557 = vlaneseq
      %v558 = vshrl.u32 %v557, 7
      %v559 = vsub.s32 0, %v558
      %v560 = vrot.slane %v552, %v559
      %v562 = vsub.f32 %v542, %v560
      %v563 = vmul.f32 %v562, 1.442695
      %v564 = vpow.pop %v563
      %v565 = vld [vmem:[#allocation6] sm:$0x1]
      %v566 = vmul.f32 %v555, %v565
      %v567 = vsel %vm544, %v564, 0.0
      %v568 = vrot.slane %v567, 4
      %v569 = vadd.f32 %v567, %v568
      %v570 = vrot.slane %v569, 2
      %v571 = vadd.f32 %v569, %v570
      %v572 = vrot.slane %v571, 1
      %v573 = vadd.f32 %v571, %v572
      %v574 = vadd.f32 %v566, %v573
      %vm575 = vcmask 0
      %576 = vst.msk [vmem:[#allocation6] sm:$0x1] %vm575, %v574
      %v577 = vld [vmem:[#allocation7] sm:$0x1]
      %579 = vset.pattern.permute.xlu0 0
      %580 = vperm.xlu0 %579, %v555
      %v581 = vpop.permute.xlu0 %580
      %v583 = vlaneseq
      %v584 = vshrl.u32 %v583, 7
      %v585 = vsub.s32 0, %v584
      %v586 = vrot.slane %v581, %v585
      %v587 = vmul.f32 %v586, %v577
      %589 = vset.pattern.permute.xlu0 0
      %590 = vperm.xlu0 %589, %v564
      %v591 = vpop.permute.xlu0 %590
      %v593 = vmul.f32 %v591, %v506
      %vm594 = vcmask 277760
      %v595 = vsel %vm594, %v593, 0.0
      %v596 = vrot.slane %v595, 4
      %v597 = vadd.f32 %v595, %v596
      %v598 = vrot.slane %v597, 2
      %v599 = vadd.f32 %v597, %v598
      %v600 = vrot.slane %v599, 1
      %v601 = vadd.f32 %v599, %v600
      %v604 = vunpack.c.l.s4 1966171168
      %v605 = vunpack.c.0.s8 %v604
      %v606 = vlaneseq
      %v607 = vshrl.u32 %v606, 7
      %v608 = vsub.s32 %v605, %v607
      %v609 = vrot.slane %v601, %v608
      %v611 = vunpack.c.l.s4 1966171168
      %v612 = vunpack.c.0.s8 %v611
      %v613 = vlaneseq
      %v614 = vshrl.u32 %v613, 7
      %v615 = vsub.s32 %v612, %v614
      %v616 = vrot.slane %v609, %v615
      %617 = vrot.lane.b32.xlu0 %v616, 96
      %v618 = vpop.permute.xlu0 %617
      %v620 = vadd.f32 %v587, %v618
      %vm621 = vcmask 8192
      %622 = vst.msk [vmem:[#allocation7] sm:$0x1] %vm621, %v620
      %623 = vst.msk [vmem:[#allocation5] sm:$0x1] %vm575, %v552
      %s624 = smul.u32 %s28, 8
      %s625 = scalar_lea.vmem [#allocation2], %s624
      %626 = vst.msk [vmem:[%s625] sm:$0xff] %vm399, %v443
      %s627 = scalar_lea.vmem [#allocation3], %s624
      %628 = vst.msk [vmem:[%s627] sm:$0xff] %vm544, %v542
      %630 = vrot.lane.b32.xlu0 %v506, 96
      %v631 = vpop.permute.xlu0 %630
      %s633 = scalar_lea.vmem [#allocation4], %s624
      %vm634 = vcmask 15360
      %635 = vst.msk [vmem:[%s633] sm:$0xff] %vm634, %v631
      %p636 = scmp.eq.s32.totalorder %s28, 1
      // Predicated region
      $region57: #{dtfd_mil_forward.1} parent=51 // pred_check
        %p637 = pneg %p636
      $region58: #{dtfd_mil_forward.1} parent=51 // pred_check_branch
        %639 = sbr.rel (%p637) target = $region60
      $region59: #{dtfd_mil_forward.1} parent=51 // pred_region
        %v640 = vld [vmem:[#allocation6] sm:$0x1]
        %v641 = vrcp.pop %v640
        %v642 = vld [vmem:[#allocation7] sm:$0x1]
        %644 = vset.pattern.permute.xlu0 0
        %645 = vperm.xlu0 %644, %v641
        %v646 = vpop.permute.xlu0 %645
        %v648 = vlaneseq
        %v649 = vshrl.u32 %v648, 7
        %v650 = vsub.s32 0, %v649
        %v651 = vrot.slane %v646, %v650
        %v652 = vmul.f32 %v642, %v651
        %v653 = vld [vmem:[%s7] sm:$0x1]
        %v654 = vadd.f32 %v652, %v653
        %655 = vst.msk [vmem:[%s360] sm:$0x1] %vm621, %v654
        %v656 = vld [vmem:[#allocation3] sm:$0xff]
        %v657 = vld [vmem:[#allocation3 + $0x8] sm:$0xff]
        %v658 = vld [vmem:[#allocation5] sm:$0x1]
        %v660 = vlaneseq
        %v661 = vshrl.u32 %v660, 7
        %v662 = vsub.s32 0, %v661
        %v663 = vrot.slane %v658, %v662
        %v665 = vsub.f32 %v656, %v663
        %v666 = vsub.f32 %v657, %v663
        %v667 = vmul.f32 %v665, 1.442695
        %v668 = vpow.pop %v667
        %v669 = vmul.f32 %v666, 1.442695
        %v670 = vpow.pop %v669
        %v671 = vlaneseq
        %v672 = vshrl.u32 %v671, 7
        %v673 = vsub.s32 0, %v672
        %v674 = vrot.slane %v641, %v673
        %v676 = vmul.f32 %v668, %v674
        %v677 = vmul.f32 %v670, %v674
        %v678 = vld [vmem:[#allocation4] sm:$0xff]
        %v679 = vld [vmem:[#allocation4 + $0x8] sm:$0xff]
        %681 = vset.pattern.permute.xlu0 0
        %682 = vperm.xlu0 %681, %v676
        %v683 = vpop.permute.xlu0 %682
        %686 = vset.pattern.permute.xlu0 0
        %687 = vperm.xlu0 %686, %v677
        %v688 = vpop.permute.xlu0 %687
        %v690 = vmul.f32 %v683, %v678
        %v691 = vmul.f32 %v688, %v679
        %v692 = vsel %vm634, %v690, -inf
        %693 = vmax.xlane.f32.xlu0 %v692
        %v694 = vpop.xlane.xlu0 %693
        %v695 = vsel %vm634, %v691, -inf
        %696 = vmax.xlane.f32.xlu0 %v695
        %v697 = vpop.xlane.xlu0 %696
        %v698 = vsub.f32 %v690, %v694
        %v699 = vsub.f32 %v691, %v697
        %v700 = vmul.f32 %v698, 1.442695
        %v701 = vpow.pop %v700
        %v702 = vmul.f32 %v699, 1.442695
        %v703 = vpow.pop %v702
        %v704 = vsel %vm634, %v701, 0.0
        %705 = vadd.xlane.f32.xlu0 %v704
        %v706 = vpop.xlane.xlu0 %705
        %v707 = vsel %vm634, %v703, 0.0
        %708 = vadd.xlane.f32.xlu0 %v707
        %v709 = vpop.xlane.xlu0 %708
        %v710 = vrcp.pop %v706
        %v711 = vrcp.pop %v709
        %v712 = vmul.f32 %v701, %v710
        %v713 = vmul.f32 %v703, %v711
        %v714 = vlaneseq
        %v715 = vshrl.u32 %v714, 7
        %v716 = vadd.s32 %v715, 8
        %vm717 = vcmask 15368
        %v718 = vsel %vm717, %v712, -inf
        %v719 = vsel %vm717, %v713, -inf
        %v720 = vmax.f32 %v718, %v719
        %v721 = vrot.slane %v720, 4
        %v722 = vmax.f32 %v720, %v721
        %v723 = vrot.slane %v722, 2
        %v724 = vmax.f32 %v722, %v723
        %v725 = vrot.slane %v724, 1
        %v726 = vmax.f32 %v724, %v725
        %v727 = vsel %vm717, %v712, inf
        %v728 = vsel %vm717, %v713, inf
        %v729 = vmin.f32 %v727, %v728
        %v730 = vrot.slane %v729, 4
        %v731 = vmin.f32 %v729, %v730
        %v732 = vrot.slane %v731, 2
        %v733 = vmin.f32 %v731, %v732
        %v734 = vrot.slane %v733, 1
        %v735 = vmin.f32 %v733, %v734
        %vm736 = vcmp.eq.f32.partialorder %v712, %v726
        %vm737 = vcmp.eq.f32.partialorder %v713, %v726
        %v738 = vsel %vm736, %v715, 16
        %v739 = vsel %vm737, %v716, 16
        %v740 = vsel %vm717, %v738, 2147483647
        %v741 = vsel %vm717, %v739, 2147483647
        %vm742 = vcmp.lt.s32.totalorder %v740, %v741
        %v743 = vsel %vm742, %v740, %v741
        %v744 = vrot.slane %v743, 4
        %vm745 = vcmp.lt.s32.totalorder %v743, %v744
        %v746 = vsel %vm745, %v743, %v744
        %v747 = vrot.slane %v746, 2
        %vm748 = vcmp.lt.s32.totalorder %v746, %v747
        %v749 = vsel %vm748, %v746, %v747
        %v750 = vrot.slane %v749, 1
        %vm751 = vcmp.lt.s32.totalorder %v749, %v750
        %v752 = vsel %vm751, %v749, %v750
        %vm753 = vcmp.eq.f32.partialorder %v712, %v735
        %vm754 = vcmp.eq.f32.partialorder %v713, %v735
        %v755 = vsel %vm753, %v715, 16
        %v756 = vsel %vm754, %v716, 16
        %v757 = vsel %vm717, %v755, 2147483647
        %v758 = vsel %vm717, %v756, 2147483647
        %vm759 = vcmp.lt.s32.totalorder %v757, %v758
        %v760 = vsel %vm759, %v757, %v758
        %v761 = vrot.slane %v760, 4
        %vm762 = vcmp.lt.s32.totalorder %v760, %v761
        %v763 = vsel %vm762, %v760, %v761
        %v764 = vrot.slane %v763, 2
        %vm765 = vcmp.lt.s32.totalorder %v763, %v764
        %v766 = vsel %vm765, %v763, %v764
        %v767 = vrot.slane %v766, 1
        %vm768 = vcmp.lt.s32.totalorder %v766, %v767
        %v769 = vsel %vm768, %v766, %v767
        %v770 = vlaneseq
        %v771 = vand.u32 %v770, 127
        %772 = vset.pattern.permute.xlu0 1
        %773 = vperm.xlu0 %772, %v752
        %v774 = vpop.permute.xlu0 %773
        %vm775 = vcmp.eq.s32.totalorder %v771, %v774
        %v776 = vsel %vm775, 1, 0
        %v777 = vcvt.s32.f32 %v776
        %778 = vset.pattern.permute.xlu0 1
        %779 = vperm.xlu0 %778, %v769
        %v780 = vpop.permute.xlu0 %779
        %vm781 = vcmp.eq.s32.totalorder %v771, %v780
        %v782 = vsel %vm781, 1, 0
        %v783 = vcvt.s32.f32 %v782
        %vm784 = vcmask 1040384
        %v785 = vsel %vm784, %v777, %v783
        %v786 = vld [vmem:[#allocation2] sm:$0xff]
        %v787 = vld [vmem:[#allocation2 + $0x8] sm:$0xff]
        %v789 = vsel %vm531, %v785, 0
        %791 = vmatprep.subr.mxu0 0.0
        %792 = vmatpush1.msra.mxu0 %v786
        %793 = vmatprep.subr.mxu0 0.0
        %794 = vmatpush1.msra.mxu0 %v787
        %795 = vmatprep.subr.mxu0 0.0
        %796 = vmatpush1.msra.mxu0 0.0
        %797 = vmatprep.subr.mxu0 0.0
        %798 = vmatpush1.msra.mxu0 0.0
        %799 = vmatprep.subr.mxu0 0.0
        %800 = vmatpush1.msra.mxu0 0.0
        %801 = vmatprep.subr.mxu0 0.0
        %802 = vmatpush1.msra.mxu0 0.0
        %803 = vmatprep.subr.mxu0 0.0
        %804 = vmatpush1.msra.mxu0 0.0
        %805 = vmatprep.subr.mxu0 0.0
        %806 = vmatpush1.msra.mxu0 0.0
        %807 = vmatprep.subr.mxu0 0.0
        %808 = vmatpush1.msra.mxu0 0.0
        %809 = vmatprep.subr.mxu0 0.0
        %810 = vmatpush1.msra.mxu0 0.0
        %811 = vmatprep.subr.mxu0 0.0
        %812 = vmatpush1.msra.mxu0 0.0
        %813 = vmatprep.subr.mxu0 0.0
        %814 = vmatpush1.msra.mxu0 0.0
        %815 = vmatprep.subr.mxu0 0.0
        %816 = vmatpush1.msra.mxu0 0.0
        %817 = vmatprep.subr.mxu0 0.0
        %818 = vmatpush1.msra.mxu0 0.0
        %819 = vmatprep.subr.mxu0 0.0
        %820 = vmatpush1.msra.mxu0 0.0
        %821 = vmatprep.subr.mxu0 0.0
        %822 = vmatpush1.msra.mxu0 0.0
        %823 = vmatprep.subr.mxu0 0.0
        %824 = vmatpush1.msra.mxu0 0.0
        %825 = vmatprep.subr.mxu0 0.0
        %826 = vmatpush1.msra.mxu0 0.0
        %827 = vmatprep.subr.mxu0 0.0
        %828 = vmatpush1.msra.mxu0 0.0
        %829 = vmatprep.subr.mxu0 0.0
        %830 = vmatpush1.msra.mxu0 0.0
        %831 = vmatprep.subr.mxu0 0.0
        %832 = vmatpush1.msra.mxu0 0.0
        %833 = vmatprep.subr.mxu0 0.0
        %834 = vmatpush1.msra.mxu0 0.0
        %835 = vmatprep.subr.mxu0 0.0
        %836 = vmatpush1.msra.mxu0 0.0
        %837 = vmatprep.subr.mxu0 0.0
        %838 = vmatpush1.msra.mxu0 0.0
        %839 = vmatprep.subr.mxu0 0.0
        %840 = vmatpush1.msra.mxu0 0.0
        %841 = vmatprep.subr.mxu0 0.0
        %842 = vmatpush1.msra.mxu0 0.0
        %843 = vmatprep.subr.mxu0 0.0
        %844 = vmatpush1.msra.mxu0 0.0
        %845 = vmatprep.subr.mxu0 0.0
        %846 = vmatpush1.msra.mxu0 0.0
        %847 = vmatprep.subr.mxu0 0.0
        %848 = vmatpush1.msra.mxu0 0.0
        %849 = vmatprep.subr.mxu0 0.0
        %850 = vmatpush1.msra.mxu0 0.0
        %851 = vmatprep.subr.mxu0 0.0
        %852 = vmatpush1.msra.mxu0 0.0
        %853 = vmatprep.subr.mxu0 0.0
        %854 = vmatpush1.msra.mxu0 0.0
        %855 = vmatprep.mubr.f32.mxu0 0.0
        %856 = vmatmul.mubr.f32.gmra.mrb[0].mxu0 %v789
        %v857 = vpop.f32.mrb[0].mxu0
        %v858 = vadd.f32 0.0, %v857
        %v859 = vpop.f32.mrb[0].mxu0
        %860 = vdwg.mxu0
        %vm861 = vcmask 254976
        %862 = vst.msk [vmem:[%s364] sm:$0x3] %vm861, %v858
      $region60: #{dtfd_mil_forward.1} parent=51 // pred_fallthru
        _
      %p863 = scmp.lt.s32.totalorder %s27, 3
      %s864 = scalar_select %p863, %s27, 3
      %s865 = scalar_lea.vmem %s8, %s864
      %p866 = scmp.lt.s32.totalorder %s27, 3
      %s867 = scalar_select %p866, %s27, 3
      %s868 = smul.addr %s867, 2
      %s869 = scalar_lea.vmem %s9, %s868
      // Predicated region
      $region61: #{dtfd_mil_forward.1} parent=51 // pred_check
        %p870 = pneg %p228
      $region62: #{dtfd_mil_forward.1} parent=51 // pred_check_branch
        %872 = sbr.rel (%p870) target = $region64
      $region63: #{dtfd_mil_forward.1} parent=51 // pred_region
        _
      $region64: #{dtfd_mil_forward.1} parent=51 // pred_fallthru
        _
      // Predicated region
      $region65: #{dtfd_mil_forward.1} parent=51 // pred_check
        %p873 = pneg %p254
      $region66: #{dtfd_mil_forward.1} parent=51 // pred_check_branch
        %875 = sbr.rel (%p873) target = $region68
      $region67: #{dtfd_mil_forward.1} parent=51 // pred_region
        _
      $region68: #{dtfd_mil_forward.1} parent=51 // pred_fallthru
        _
    $region52: #{dtfd_mil_forward.1} parent=5 // pred_fallthru
      _
    %p876 = scmp.le.s32.totalorder 2, %s18
    // Predicated region
    $region69: #{dtfd_mil_forward.1} parent=5 // pred_check
      %p877 = pneg %p876
    $region70: #{dtfd_mil_forward.1} parent=5 // pred_check_branch
      %879 = sbr.rel (%p877) target = $region72
    $region71: #{dtfd_mil_forward.1} parent=5 // pred_region
      %s880 = ssub.s32 %s18, 2
      // Predicated region
      $region73: #{dtfd_mil_forward.1} parent=71 // pred_check
        %p881 = pneg %p234
      $region74: #{dtfd_mil_forward.1} parent=71 // pred_check_branch
        %883 = sbr.rel (%p881) target = $region76
      $region75: #{dtfd_mil_forward.1} parent=71 // pred_region
        %p884 = scmp.lt.s32.totalorder %s29, 3
        %s885 = scalar_select %p884, %s29, 3
        %s886 = scalar_lea.vmem %s8, %s885
      $region76: #{dtfd_mil_forward.1} parent=71 // pred_fallthru
        _
      // Predicated region
      $region77: #{dtfd_mil_forward.1} parent=71 // pred_check
        %p887 = pneg %p260
      $region78: #{dtfd_mil_forward.1} parent=71 // pred_check_branch
        %889 = sbr.rel (%p887) target = $region80
      $region79: #{dtfd_mil_forward.1} parent=71 // pred_region
        %p890 = scmp.lt.s32.totalorder %s29, 3
        %s891 = scalar_select %p890, %s29, 3
        %s892 = smul.addr %s891, 2
        %s893 = scalar_lea.vmem %s9, %s892
      $region80: #{dtfd_mil_forward.1} parent=71 // pred_fallthru
        _
    $region72: #{dtfd_mil_forward.1} parent=5 // pred_fallthru
      _
  $region6: #{dtfd_mil_forward.1} parent=0 // loop_footer
    %s22 = sadd.s32 1, %s18
  $region7: #{dtfd_mil_forward.1} parent=0 // loop_footer_branch
    %17 = sbr.rel target = $region3
  $region8: #{dtfd_mil_forward.1} parent=0 // loop_exit
    _

</llo_original>
